<compile_context>
chip_gen: v7x
topology: tpu7x:2x2x1
jax: 0.10.0
libtpu: 0.0.40
codegen_flags: <defaults>
</compile_context>

<pallas_src>
import functools

import jax
import jax.numpy as jnp
from jax.experimental import pallas as pl
from jax.experimental.pallas import tpu as pltpu


def _critic_kernel(x_ref, slab_ref, o_ref):
    # x_ref:    (B, D)    f32
    # slab_ref: (D+2, H)  f32  rows [0:D]=w1, [D]=b1, [D+1]=w2/B
    D = x_ref.shape[1]
    x = x_ref[...]                                                     # (B, D)
    w1 = slab_ref[0:D, :]                                              # (D, H)
    b1 = slab_ref[D:D + 1, :]                                          # (1, H)
    w2s = slab_ref[D + 1:D + 2, :]                                     # (1, H), pre-scaled by 1/B

    # Layer 1 on the MXU with f32 accumulation; bias + ReLU on the VPU.
    h = jnp.dot(x, w1, preferred_element_type=jnp.float32)             # (B, H)
    h = jnp.maximum(h + b1, 0.0)

    # Layer 2 + mean folded into one multiply + full reduce (no 2nd matmul,
    # no scalar divide on the critical path):
    #   mean(h @ w2_col + b2) == sum(h * (w2_row / B)) + b2   (b2 added in wrapper)
    o_ref[0, 0] = jnp.sum(h * w2s)


def pack_critic_params(w1, b1, w2, batch_size):
    """Pack the critic parameters into a single (D+2, H) f32 VMEM slab.

    Call this ONCE when the parameters are created/updated (e.g. after an
    optimizer step), not per forward call.

      w1: (D, H)  -- transpose of PyTorch's (H, D) layer-1 weight
      b1: (H,)
      w2: (H,)    -- PyTorch's (1, H) layer-2 weight, squeezed
      batch_size: static B used to fold the mean's 1/B into the w2 row.
    """
    D, H = w1.shape
    assert b1.shape == (H,) and w2.shape == (H,)
    w2_scaled = w2.astype(jnp.float32) / jnp.float32(batch_size)
    slab = jnp.concatenate(
        [
            w1.astype(jnp.float32),
            b1.astype(jnp.float32)[None, :],
            w2_scaled[None, :],
        ],
        axis=0,
    )                                                                  # (D+2, H)
    return slab


@functools.partial(jax.jit, static_argnames=())
def binary_classifier_critic_forward(query_feat, slab, b2):
    """mean(ReLU(x @ w1 + b1) @ w2 + b2) as a single gridless Pallas call.

    Args:
      query_feat: (B, D) f32
      slab: (D+2, H) f32 packed params from `pack_critic_params` (w2 row is
            already scaled by 1/B for this batch size)
      b2: () f32 layer-2 bias (added in the wrapper, outside the kernel)
    Returns a scalar f32.
    """
    B, D = query_feat.shape
    H = slab.shape[1]
    assert slab.shape == (D + 2, H)

    cost = pl.CostEstimate(
        flops=2 * B * D * H + 4 * B * H,          # matmul + bias/relu/mul/reduce
        transcendentals=0,
        bytes_accessed=4 * (B * D + (D + 2) * H + 1),
    )

    out = pl.pallas_call(
        _critic_kernel,
        out_shape=jax.ShapeDtypeStruct((1, 1), jnp.float32),
        in_specs=[
            pl.BlockSpec(memory_space=pltpu.MemorySpace.VMEM),   # x    (B, D)
            pl.BlockSpec(memory_space=pltpu.MemorySpace.VMEM),   # slab (D+2, H)
        ],
        out_specs=pl.BlockSpec(memory_space=pltpu.MemorySpace.SMEM),
        cost_estimate=cost,
    )(query_feat.astype(jnp.float32), slab)

    # b2 add fuses with the scalar slice; keeps the in-kernel scalar tail minimal.
    # TODO(synk): for production batch sizes (thousands of rows) convert this to
    # a B-tiled streaming reduction (grid over B, large (TB, D) x-blocks in bf16,
    # f32 partial-sum scratch, per-core partials on v7x). At B~8 the gridless
    # single invocation is strictly cheaper.
    return out[0, 0] + b2.astype(jnp.float32)


def _reference(query_feat, w1, b1, w2, b2):
    h = jnp.maximum(query_feat @ w1 + b1[None, :], 0.0)
    v = h @ w2[:, None] + b2
    return jnp.mean(v)


if __name__ == "__main__":
    # args.out_dim = 32, batch of 8 query features.
    B, D = 8, 32
    H = D // 2

    key = jax.random.PRNGKey(0)
    kx, kw1, kb1, kw2, kb2 = jax.random.split(key, 5)

    query_feat = jax.random.normal(kx, (B, D), dtype=jnp.float32)

    # Deterministic synthetic parameter init (roughly matches nn.Linear scale).
    w1 = jax.random.uniform(kw1, (D, H), jnp.float32, -1.0, 1.0) / jnp.sqrt(D)
    b1 = jax.random.uniform(kb1, (H,), jnp.float32, -1.0, 1.0) / jnp.sqrt(D)
    w2 = jax.random.uniform(kw2, (H,), jnp.float32, -1.0, 1.0) / jnp.sqrt(H)
    b2 = jax.random.uniform(kb2, (), jnp.float32, -1.0, 1.0) / jnp.sqrt(H)

    # Pack once (hoisted out of the per-call path).
    slab = pack_critic_params(w1, b1, w2, batch_size=B)

    value = binary_classifier_critic_forward(query_feat, slab, b2)
    value = jax.block_until_ready(value)

    ref = _reference(query_feat, w1, b1, w2, b2)
    assert jnp.allclose(value, ref, atol=1e-5, rtol=1e-5), (value, ref)

    # TODO(synk): update_critic (MSE loss + Adam step) is training-side and not
    # part of the forward pass; it is intentionally not implemented as a kernel.
    print("KERNEL_OK")
</pallas_src>

<mosaic_0001>
module attributes {stable_mosaic.version = 11 : i64} {
  func.func @_critic_kernel(%arg0: memref<8x32xf32, #tpu.memory_space<vmem>>, %arg1: memref<34x16xf32, #tpu.memory_space<vmem>>, %arg2: memref<1x1xf32, #tpu.memory_space<smem>>) attributes {dimension_semantics = [], scalar_prefetch = 0 : i64, scratch_operands = 0 : i64, tpu.core_type = #tpu.core_type<tc>} {
    %c0 = arith.constant 0 : index
    %c0_0 = arith.constant 0 : index
    %0 = vector.load %arg0[%c0, %c0_0] : memref<8x32xf32, #tpu.memory_space<vmem>>, vector<8x32xf32>
    %c0_1 = arith.constant 0 : index
    %c0_2 = arith.constant 0 : index
    %1 = vector.load %arg1[%c0_1, %c0_2] : memref<34x16xf32, #tpu.memory_space<vmem>>, vector<32x16xf32>
    %c32 = arith.constant 32 : index
    %c0_3 = arith.constant 0 : index
    %2 = vector.load %arg1[%c32, %c0_3] : memref<34x16xf32, #tpu.memory_space<vmem>>, vector<1x16xf32>
    %c33 = arith.constant 33 : index
    %c0_4 = arith.constant 0 : index
    %3 = vector.load %arg1[%c33, %c0_4] : memref<34x16xf32, #tpu.memory_space<vmem>>, vector<1x16xf32>
    %cst = arith.constant dense<0.000000e+00> : vector<8x16xf32>
    %4 = tpu.matmul %0, %1, %cst {dimension_numbers = #tpu.dot_dimension_numbers<[1], [0], [0], [1], [0, 0, 1, 1], [], []>} : vector<8x32xf32>, vector<32x16xf32>, vector<8x16xf32> -> vector<8x16xf32>
    %5 = vector.broadcast %2 : vector<1x16xf32> to vector<8x16xf32>
    %6 = arith.addf %4, %5 : vector<8x16xf32>
    %cst_5 = arith.constant 0.000000e+00 : f32
    %7 = vector.broadcast %cst_5 : f32 to vector<8x16xf32>
    %8 = arith.maximumf %6, %7 : vector<8x16xf32>
    %9 = vector.broadcast %3 : vector<1x16xf32> to vector<8x16xf32>
    %10 = arith.mulf %8, %9 : vector<8x16xf32>
    %11 = vector.shape_cast %10 : vector<8x16xf32> to vector<1x8x16xf32>
    %cst_6 = arith.constant dense<0.000000e+00> : vector<1xf32>
    %12 = vector.multi_reduction <add>, %11, %cst_6 [1, 2] : vector<1x8x16xf32> to vector<1xf32>
    %13 = vector.shape_cast %12 : vector<1xf32> to vector<1x1x1xf32>
    %14 = vector.extract %13[0, 0, 0] : f32 from vector<1x1x1xf32>
    %c0_7 = arith.constant 0 : index
    %c0_8 = arith.constant 0 : index
    %15 = memref.load %arg2[%c0_7, %c0_8] : memref<1x1xf32, #tpu.memory_space<smem>>
    memref.store %14, %arg2[%c0_7, %c0_8] : memref<1x1xf32, #tpu.memory_space<smem>>
    return
  }
}

</mosaic_0001>

<llo_original>
// kernel: binary_classifier_critic_forward.1
$region0: #{binary_classifier_critic_forward.1}
  #allocation0 [shape = 'u32[]', space=smem, size = 0x4, offset = 0x4, fixed_abs, tag = 'smem constant byte address 0x4 - core index']
  #allocation1 [shape = 'u32[144,128]{1,0:T(1,128)}', space=vmem, size = 0x12000, scoped, tag = 'internal scratch']
  %s0 = inlined_call_operand.vmem [shape: f32[8,32], index: 0, kind: input, shape index: {}]
  %s1 = inlined_call_operand.vmem [shape: f32[34,16], index: 1, kind: input, shape index: {}]
  %s2 = inlined_call_operand.hbm [shape: f32[1,1], index: 2, kind: output, shape index: {}]
  %s3 = sld [smem:[#allocation0]]
  $region18: #{binary_classifier_critic_forward.1} parent=0
    _
  %s5 = ssub.s32 1, %s3
  %s6 = scalar_select 0, %s5, %s3
  $region1: #{binary_classifier_critic_forward.1} parent=0
    #allocation2 [shape = 'u8[512]{0}', space=smem, size = 0x200, scoped, tag = 'output window, operand 0, single buffered']
    #allocation3 [shape = 's32[1]{0}', space=sflag, size = 0x4, scoped, tag = 'scoped memory for binary_classifier_critic_forward.1']
    %7 = vsyncpa [#allocation3], 0
    // Predicated region
    $region2: #{binary_classifier_critic_forward.1} parent=1 // pred_check
      _
    $region3: #{binary_classifier_critic_forward.1} parent=1 // pred_check_branch
      %9 = sbr.rel (0) target = $region5
    $region4: #{binary_classifier_critic_forward.1} parent=1 // pred_region
      _
    $region5: #{binary_classifier_critic_forward.1} parent=1 // pred_fallthru
      _
    // Predicated region
    $region6: #{binary_classifier_critic_forward.1} parent=1 // pred_check
      _
    $region7: #{binary_classifier_critic_forward.1} parent=1 // pred_check_branch
      %11 = sbr.rel (0) target = $region9
    $region8: #{binary_classifier_critic_forward.1} parent=1 // pred_region
      _
    $region9: #{binary_classifier_critic_forward.1} parent=1 // pred_fallthru
      _
    %v12 = vld [vmem:[%s0] sm:$0xff]
    %v13 = vld [vmem:[%s1] sm:$0xff]
    %v14 = vld [vmem:[%s1 + $0x8] sm:$0xff]
    %v15 = vld [vmem:[%s1 + $0x10] sm:$0xff]
    %v16 = vld [vmem:[%s1 + $0x18] sm:$0xff]
    %v17 = vld [vmem:[%s1 + $0x20] sm:$0x1]
    %v18 = vld [vmem:[%s1 + $0x21] sm:$0x1]
    %v19 = vlaneseq
    %v20 = vshrl.u32 %v19, 7
    %v21 = vsub.s32 0, %v20
    %v22 = vrot.slane %v17, %v21
    %vm23 = vcmask 261120
    %v25 = vsel %vm23, %v12, 0
    %27 = vmatprep.subr.mxu0 0.0
    %28 = vmatpush1.msra.mxu0 %v13
    %29 = vmatprep.subr.mxu0 0.0
    %30 = vmatpush1.msra.mxu0 %v14
    %31 = vmatprep.subr.mxu0 0.0
    %32 = vmatpush1.msra.mxu0 %v15
    %33 = vmatprep.subr.mxu0 0.0
    %34 = vmatpush1.msra.mxu0 %v16
    %35 = vmatprep.subr.mxu0 0.0
    %36 = vmatpush1.msra.mxu0 0.0
    %37 = vmatprep.subr.mxu0 0.0
    %38 = vmatpush1.msra.mxu0 0.0
    %39 = vmatprep.subr.mxu0 0.0
    %40 = vmatpush1.msra.mxu0 0.0
    %41 = vmatprep.subr.mxu0 0.0
    %42 = vmatpush1.msra.mxu0 0.0
    %43 = vmatprep.subr.mxu0 0.0
    %44 = vmatpush1.msra.mxu0 0.0
    %45 = vmatprep.subr.mxu0 0.0
    %46 = vmatpush1.msra.mxu0 0.0
    %47 = vmatprep.subr.mxu0 0.0
    %48 = vmatpush1.msra.mxu0 0.0
    %49 = vmatprep.subr.mxu0 0.0
    %50 = vmatpush1.msra.mxu0 0.0
    %51 = vmatprep.subr.mxu0 0.0
    %52 = vmatpush1.msra.mxu0 0.0
    %53 = vmatprep.subr.mxu0 0.0
    %54 = vmatpush1.msra.mxu0 0.0
    %55 = vmatprep.subr.mxu0 0.0
    %56 = vmatpush1.msra.mxu0 0.0
    %57 = vmatprep.subr.mxu0 0.0
    %58 = vmatpush1.msra.mxu0 0.0
    %59 = vmatprep.subr.mxu0 0.0
    %60 = vmatpush1.msra.mxu0 0.0
    %61 = vmatprep.subr.mxu0 0.0
    %62 = vmatpush1.msra.mxu0 0.0
    %63 = vmatprep.subr.mxu0 0.0
    %64 = vmatpush1.msra.mxu0 0.0
    %65 = vmatprep.subr.mxu0 0.0
    %66 = vmatpush1.msra.mxu0 0.0
    %67 = vmatprep.subr.mxu0 0.0
    %68 = vmatpush1.msra.mxu0 0.0
    %69 = vmatprep.subr.mxu0 0.0
    %70 = vmatpush1.msra.mxu0 0.0
    %71 = vmatprep.subr.mxu0 0.0
    %72 = vmatpush1.msra.mxu0 0.0
    %73 = vmatprep.subr.mxu0 0.0
    %74 = vmatpush1.msra.mxu0 0.0
    %75 = vmatprep.subr.mxu0 0.0
    %76 = vmatpush1.msra.mxu0 0.0
    %77 = vmatprep.subr.mxu0 0.0
    %78 = vmatpush1.msra.mxu0 0.0
    %79 = vmatprep.subr.mxu0 0.0
    %80 = vmatpush1.msra.mxu0 0.0
    %81 = vmatprep.subr.mxu0 0.0
    %82 = vmatpush1.msra.mxu0 0.0
    %83 = vmatprep.subr.mxu0 0.0
    %84 = vmatpush1.msra.mxu0 0.0
    %85 = vmatprep.subr.mxu0 0.0
    %86 = vmatpush1.msra.mxu0 0.0
    %87 = vmatprep.subr.mxu0 0.0
    %88 = vmatpush1.msra.mxu0 0.0
    %89 = vmatprep.subr.mxu0 0.0
    %90 = vmatpush1.msra.mxu0 0.0
    %91 = vmatprep.mubr.f32.mxu0 0.0
    %92 = vmatmul.mubr.f32.gmra.mrb[0].mxu0 %v25
    %v93 = vpop.f32.mrb[0].mxu0
    %v94 = vadd.f32 %v22, %v93
    %v95 = vpop.f32.mrb[0].mxu0
    %96 = vdwg.mxu0
    %v97 = vmax.f32 %v94, 0.0
    %v98 = vlaneseq
    %v99 = vshrl.u32 %v98, 7
    %v100 = vsub.s32 0, %v99
    %v101 = vrot.slane %v18, %v100
    %v102 = vmul.f32 %v97, %v101
    %vm103 = vcmask 130048
    %v104 = vsel %vm103, %v102, 0.0
    %105 = vadd.xlane.f32.xlu0 %v104
    %v106 = vpop.xlane.xlu0 %105
    %v107 = vrot.slane %v106, 4
    %v108 = vadd.f32 %v106, %v107
    %v109 = vrot.slane %v108, 2
    %v110 = vadd.f32 %v108, %v109
    %v111 = vrot.slane %v110, 1
    %v112 = vadd.f32 %v110, %v111
    %s113 = vtos %v112
    %s114 = scalar_lea.smem [#allocation2], 0
    %115 = sst [smem:[%s114]] %s113
    // Predicated region
    $region10: #{binary_classifier_critic_forward.1} parent=1 // pred_check
      _
    $region11: #{binary_classifier_critic_forward.1} parent=1 // pred_check_branch
      %117 = sbr.rel (0) target = $region13
    $region12: #{binary_classifier_critic_forward.1} parent=1 // pred_region
      %s119 = ssub.s32 16, 16
      %120 = vsyncadd [#allocation3], %s119
      %123 = dma.smem_to_hbm [#allocation2], 16, %s2, [#allocation3]
    $region13: #{binary_classifier_critic_forward.1} parent=1 // pred_fallthru
      _
    // Predicated region
    $region14: #{binary_classifier_critic_forward.1} parent=1 // pred_check
      _
    $region15: #{binary_classifier_critic_forward.1} parent=1 // pred_check_branch
      %125 = sbr.rel (0) target = $region17
    $region16: #{binary_classifier_critic_forward.1} parent=1 // pred_region
      %126 = dma.done [#allocation3], 16
    $region17: #{binary_classifier_critic_forward.1} parent=1 // pred_fallthru
      _
    %127 = sfence
    %128 = vsyncpa [#allocation3], 1

</llo_original>
